<compile_context>
chip_gen: v7x
topology: tpu7x:2x2x1
jax: 0.10.0
libtpu: 0.0.40
codegen_flags: <defaults>
</compile_context>

<pallas_src>
import functools

import jax
import jax.numpy as jnp
from jax import lax
from jax.experimental import pallas as pl
from jax.experimental.pallas import tpu as pltpu


def ann_kernel(x_ref, w1t_ref, b1_ref, w2t_ref, b2_ref, w3t_ref, b3_ref, ot_ref):
    """One batch tile; intermediates kept feature-major (batch on lanes)."""
    x = x_ref[...]                                                       # (TB, IN) f32
    # h1^T = W1^T @ x^T : contract the feature axis of both operands directly,
    # so x^T is never materialized in HBM or VMEM.
    h1 = lax.dot_general(w1t_ref[...], x, (((1,), (1,)), ((), ())),
                         preferred_element_type=jnp.float32)             # (H1, TB)
    h1 = jnp.maximum(h1 + b1_ref[...], 0.0)
    h2 = jnp.dot(w2t_ref[...], h1, preferred_element_type=jnp.float32)   # (H2, TB)
    h2 = jnp.maximum(h2 + b2_ref[...], 0.0)
    out = jnp.dot(w3t_ref[...], h2, preferred_element_type=jnp.float32)  # (OUT, TB)
    ot_ref[...] = out + b3_ref[...]


def _choose_tile(batch, tb):
    """Static batch-tile / padding selection (shapes are static under jit)."""
    b_lane = pl.cdiv(batch, 128) * 128            # lane-align the batch
    if tb is None:
        if b_lane <= 256:
            tb = b_lane                           # one grid step for tiny batches
        else:
            # ~2 big steps (v7x megacore friendly); cap tile at 4096 rows so
            # double-buffered x/out tiles stay far under scoped-VMEM defaults.
            tb = min(4096, pl.cdiv(pl.cdiv(b_lane, 2), 128) * 128)
    tb = max(128, min(tb, b_lane))
    b_pad = pl.cdiv(b_lane, tb) * tb
    return tb, b_pad


@functools.partial(jax.jit, static_argnames=("tb",))
def ann_forward(x, w1, b1, w2, b2, w3, b3, *, tb=None):
    """y = relu(x@W1+b1) -> relu(.@W2+b2) -> .@W3+b3, batch-tiled Pallas kernel.

    Weights are stored as (in_features, out_features) (transposed vs PyTorch).
    """
    B, in_f = x.shape
    h1_f = w1.shape[1]
    h2_f = w2.shape[1]
    out_f = w3.shape[1]

    tb_, b_pad = _choose_tile(B, tb)
    grid = (b_pad // tb_,)

    x_p = x.astype(jnp.float32)
    if b_pad != B:                                # pad only (no cast/transpose pass)
        x_p = jnp.pad(x_p, ((0, b_pad - B), (0, 0)))

    # Tiny weights: feature-major (out, in) layout, VMEM-resident across steps.
    w1t = w1.T.astype(jnp.float32)                # (H1, IN)
    w2t = w2.T.astype(jnp.float32)                # (H2, H1)
    w3t = w3.T.astype(jnp.float32)                # (OUT, H2)
    b1c = b1.reshape(h1_f, 1).astype(jnp.float32)
    b2c = b2.reshape(h2_f, 1).astype(jnp.float32)
    b3c = b3.reshape(out_f, 1).astype(jnp.float32)

    inv = lambda i: (0, 0)  # grid-invariant blocks: weights/biases stay in VMEM

    flops = 2 * b_pad * (in_f * h1_f + h1_f * h2_f + h2_f * out_f)
    bytes_accessed = 4 * (b_pad * (in_f + out_f)
                          + in_f * h1_f + h1_f
                          + h1_f * h2_f + h2_f
                          + h2_f * out_f + out_f)

    out_t = pl.pallas_call(
        ann_kernel,
        out_shape=jax.ShapeDtypeStruct((out_f, b_pad), jnp.float32),
        grid=grid,
        in_specs=[
            pl.BlockSpec((tb_, in_f), lambda i: (i, 0)),  # x tile, natural layout
            pl.BlockSpec((h1_f, in_f), inv),              # W1^T
            pl.BlockSpec((h1_f, 1), inv),                 # b1
            pl.BlockSpec((h2_f, h1_f), inv),              # W2^T
            pl.BlockSpec((h2_f, 1), inv),                 # b2
            pl.BlockSpec((out_f, h2_f), inv),             # W3^T
            pl.BlockSpec((out_f, 1), inv),                # b3
        ],
        out_specs=pl.BlockSpec((out_f, tb_), lambda i: (0, i)),  # lane-dense store
        compiler_params=pltpu.CompilerParams(
            dimension_semantics=("parallel",)),
        cost_estimate=pl.CostEstimate(flops=flops, transcendentals=0,
                                      bytes_accessed=bytes_accessed),
    )(x_p, w1t, b1c, w2t, b2c, w3t, b3c)

    return out_t[:, :B].T  # back to PyTorch (B, out_features), drop batch padding


def init_params(key, input_features=8, hidden1=25, hidden2=20, out_features=2):
    """Deterministic PyTorch-Linear-style init (uniform(-1/sqrt(fan_in), 1/sqrt(fan_in)))."""
    ks = jax.random.split(key, 6)

    def lin(kw, kb, fan_in, fan_out):
        bound = 1.0 / jnp.sqrt(fan_in)
        w = jax.random.uniform(kw, (fan_in, fan_out), jnp.float32, -bound, bound)
        b = jax.random.uniform(kb, (1, fan_out), jnp.float32, -bound, bound)
        return w, b

    w1, b1 = lin(ks[0], ks[1], input_features, hidden1)
    w2, b2 = lin(ks[2], ks[3], hidden1, hidden2)
    w3, b3 = lin(ks[4], ks[5], hidden2, out_features)
    return w1, b1, w2, b2, w3, b3


def reference_forward(x, w1, b1, w2, b2, w3, b3):
    h = jnp.maximum(x @ w1 + b1, 0.0)
    h = jnp.maximum(h @ w2 + b2, 0.0)
    return h @ w3 + b3


if __name__ == "__main__":
    key = jax.random.PRNGKey(0)
    k_x, k_p = jax.random.split(key)

    # Small, but enough batch for a 2-step "parallel" grid (auto tb -> 256).
    batch = 512
    input_features, hidden1, hidden2, out_features = 8, 25, 20, 2

    x = jax.random.normal(k_x, (batch, input_features), jnp.float32)
    params = init_params(k_p, input_features, hidden1, hidden2, out_features)

    out = jax.block_until_ready(ann_forward(x, *params))
    assert out.shape == (batch, out_features)

    ref = reference_forward(x, *params)
    max_err = float(jnp.max(jnp.abs(out - ref)))
    assert jnp.allclose(out, ref, atol=2e-2, rtol=2e-2), max_err

    # Tiny, non-tile-aligned batch exercises the pad/slice path (grid=(1,)).
    out_small = jax.block_until_ready(ann_forward(x[:7], *params))
    assert out_small.shape == (7, out_features)
    assert jnp.allclose(out_small, ref[:7], atol=2e-2, rtol=2e-2)

    print("KERNEL_OK")
</pallas_src>

<mosaic_0001>
module attributes {stable_mosaic.version = 11 : i64} {
  func.func @ann_kernel(%arg0: i32, %arg1: memref<256x8xf32, #tpu.memory_space<vmem>>, %arg2: memref<25x8xf32, #tpu.memory_space<vmem>>, %arg3: memref<25x1xf32, #tpu.memory_space<vmem>>, %arg4: memref<20x25xf32, #tpu.memory_space<vmem>>, %arg5: memref<20x1xf32, #tpu.memory_space<vmem>>, %arg6: memref<2x20xf32, #tpu.memory_space<vmem>>, %arg7: memref<2x1xf32, #tpu.memory_space<vmem>>, %arg8: memref<2x256xf32, #tpu.memory_space<vmem>>) attributes {dimension_semantics = [#tpu.dimension_semantics<parallel>], iteration_bounds = array<i64: 2>, scalar_prefetch = 0 : i64, scratch_operands = 0 : i64, tpu.core_type = #tpu.core_type<tc>, window_params = [{transform_indices = @transform_0, window_bounds = array<i64: 256, 8>}, {pipeline_mode = #tpu.pipeline_mode<synchronous>, transform_indices = @transform_1, window_bounds = array<i64: 25, 8>}, {pipeline_mode = #tpu.pipeline_mode<synchronous>, transform_indices = @transform_2, window_bounds = array<i64: 25, 1>}, {pipeline_mode = #tpu.pipeline_mode<synchronous>, transform_indices = @transform_3, window_bounds = array<i64: 20, 25>}, {pipeline_mode = #tpu.pipeline_mode<synchronous>, transform_indices = @transform_4, window_bounds = array<i64: 20, 1>}, {pipeline_mode = #tpu.pipeline_mode<synchronous>, transform_indices = @transform_5, window_bounds = array<i64: 2, 20>}, {pipeline_mode = #tpu.pipeline_mode<synchronous>, transform_indices = @transform_6, window_bounds = array<i64: 2, 1>}, {transform_indices = @transform_7, window_bounds = array<i64: 2, 256>}]} {
    %c0 = arith.constant 0 : index
    %c0_0 = arith.constant 0 : index
    %0 = vector.load %arg1[%c0, %c0_0] : memref<256x8xf32, #tpu.memory_space<vmem>>, vector<256x8xf32>
    %c0_1 = arith.constant 0 : index
    %c0_2 = arith.constant 0 : index
    %1 = vector.load %arg2[%c0_1, %c0_2] : memref<25x8xf32, #tpu.memory_space<vmem>>, vector<25x8xf32>
    %cst = arith.constant dense<0.000000e+00> : vector<25x256xf32>
    %2 = tpu.matmul %1, %0, %cst {dimension_numbers = #tpu.dot_dimension_numbers<[1], [1], [0], [0], [0, 0, 1, 0], [], []>} : vector<25x8xf32>, vector<256x8xf32>, vector<25x256xf32> -> vector<25x256xf32>
    %c0_3 = arith.constant 0 : index
    %c0_4 = arith.constant 0 : index
    %3 = vector.load %arg3[%c0_3, %c0_4] : memref<25x1xf32, #tpu.memory_space<vmem>>, vector<25x1xf32>
    %4 = vector.broadcast %3 : vector<25x1xf32> to vector<25x256xf32>
    %5 = arith.addf %2, %4 : vector<25x256xf32>
    %cst_5 = arith.constant 0.000000e+00 : f32
    %6 = vector.broadcast %cst_5 : f32 to vector<25x256xf32>
    %7 = arith.maximumf %5, %6 : vector<25x256xf32>
    %c0_6 = arith.constant 0 : index
    %c0_7 = arith.constant 0 : index
    %8 = vector.load %arg4[%c0_6, %c0_7] : memref<20x25xf32, #tpu.memory_space<vmem>>, vector<20x25xf32>
    %cst_8 = arith.constant dense<0.000000e+00> : vector<20x256xf32>
    %9 = tpu.matmul %8, %7, %cst_8 {dimension_numbers = #tpu.dot_dimension_numbers<[1], [0], [0], [1], [0, 0, 1, 1], [], []>} : vector<20x25xf32>, vector<25x256xf32>, vector<20x256xf32> -> vector<20x256xf32>
    %c0_9 = arith.constant 0 : index
    %c0_10 = arith.constant 0 : index
    %10 = vector.load %arg5[%c0_9, %c0_10] : memref<20x1xf32, #tpu.memory_space<vmem>>, vector<20x1xf32>
    %11 = vector.broadcast %10 : vector<20x1xf32> to vector<20x256xf32>
    %12 = arith.addf %9, %11 : vector<20x256xf32>
    %cst_11 = arith.constant 0.000000e+00 : f32
    %13 = vector.broadcast %cst_11 : f32 to vector<20x256xf32>
    %14 = arith.maximumf %12, %13 : vector<20x256xf32>
    %c0_12 = arith.constant 0 : index
    %c0_13 = arith.constant 0 : index
    %15 = vector.load %arg6[%c0_12, %c0_13] : memref<2x20xf32, #tpu.memory_space<vmem>>, vector<2x20xf32>
    %cst_14 = arith.constant dense<0.000000e+00> : vector<2x256xf32>
    %16 = tpu.matmul %15, %14, %cst_14 {dimension_numbers = #tpu.dot_dimension_numbers<[1], [0], [0], [1], [0, 0, 1, 1], [], []>} : vector<2x20xf32>, vector<20x256xf32>, vector<2x256xf32> -> vector<2x256xf32>
    %c0_15 = arith.constant 0 : index
    %c0_16 = arith.constant 0 : index
    %17 = vector.load %arg7[%c0_15, %c0_16] : memref<2x1xf32, #tpu.memory_space<vmem>>, vector<2x1xf32>
    %18 = vector.broadcast %17 : vector<2x1xf32> to vector<2x256xf32>
    %19 = arith.addf %16, %18 : vector<2x256xf32>
    %c0_17 = arith.constant 0 : index
    %c0_18 = arith.constant 0 : index
    %20 = vector.load %arg8[%c0_17, %c0_18] : memref<2x256xf32, #tpu.memory_space<vmem>>, vector<2x256xf32>
    tpu.vector_store %arg8[%c0_17, %c0_18], %19 {strides = array<i32>} : memref<2x256xf32, #tpu.memory_space<vmem>>, vector<2x256xf32>,
    return
  }
  func.func @transform_0(%arg0: i32) -> (i32, i32) {
    %c0_i32 = arith.constant 0 : i32
    %c0_i32_0 = arith.constant 0 : i32
    return %arg0, %c0_i32 : i32, i32
  }
  func.func @transform_1(%arg0: i32) -> (i32, i32) {
    %c0_i32 = arith.constant 0 : i32
    %c0_i32_0 = arith.constant 0 : i32
    %c0_i32_1 = arith.constant 0 : i32
    return %c0_i32, %c0_i32_0 : i32, i32
  }
  func.func @transform_2(%arg0: i32) -> (i32, i32) {
    %c0_i32 = arith.constant 0 : i32
    %c0_i32_0 = arith.constant 0 : i32
    %c0_i32_1 = arith.constant 0 : i32
    return %c0_i32, %c0_i32_0 : i32, i32
  }
  func.func @transform_3(%arg0: i32) -> (i32, i32) {
    %c0_i32 = arith.constant 0 : i32
    %c0_i32_0 = arith.constant 0 : i32
    %c0_i32_1 = arith.constant 0 : i32
    return %c0_i32, %c0_i32_0 : i32, i32
  }
  func.func @transform_4(%arg0: i32) -> (i32, i32) {
    %c0_i32 = arith.constant 0 : i32
    %c0_i32_0 = arith.constant 0 : i32
    %c0_i32_1 = arith.constant 0 : i32
    return %c0_i32, %c0_i32_0 : i32, i32
  }
  func.func @transform_5(%arg0: i32) -> (i32, i32) {
    %c0_i32 = arith.constant 0 : i32
    %c0_i32_0 = arith.constant 0 : i32
    %c0_i32_1 = arith.constant 0 : i32
    return %c0_i32, %c0_i32_0 : i32, i32
  }
  func.func @transform_6(%arg0: i32) -> (i32, i32) {
    %c0_i32 = arith.constant 0 : i32
    %c0_i32_0 = arith.constant 0 : i32
    %c0_i32_1 = arith.constant 0 : i32
    return %c0_i32, %c0_i32_0 : i32, i32
  }
  func.func @transform_7(%arg0: i32) -> (i32, i32) {
    %c0_i32 = arith.constant 0 : i32
    %c0_i32_0 = arith.constant 0 : i32
    return %c0_i32, %arg0 : i32, i32
  }
}

</mosaic_0001>

<llo_original>
// kernel: ann_forward.1
$region0: #{ann_forward.1}
  #allocation0 [shape = 'u32[]', space=smem, size = 0x4, offset = 0x4, fixed_abs, tag = 'smem constant byte address 0x4 - core index']
  #allocation1 [shape = 'u32[144,128]{1,0:T(1,128)}', space=vmem, size = 0x12000, scoped, tag = 'internal scratch']
  %s0 = inlined_call_operand.vmem [shape: f32[512,8], index: 0, kind: input, shape index: {}]
  %s1 = inlined_call_operand.vmem [shape: f32[25,8], index: 1, kind: input, shape index: {}]
  %s2 = inlined_call_operand.vmem [shape: f32[25,1], index: 2, kind: input, shape index: {}]
  %s3 = inlined_call_operand.vmem [shape: f32[20,25], index: 3, kind: input, shape index: {}]
  %s4 = inlined_call_operand.vmem [shape: f32[20,1], index: 4, kind: input, shape index: {}]
  %s5 = inlined_call_operand.vmem [shape: f32[2,20], index: 5, kind: input, shape index: {}]
  %s6 = inlined_call_operand.vmem [shape: f32[2,1], index: 6, kind: input, shape index: {}]
  %s7 = inlined_call_operand.hbm [shape: f32[2,512], index: 7, kind: output, shape index: {}]
  %s8 = sld [smem:[#allocation0]]
  $region61: #{ann_forward.1} parent=0
    _
  %s10 = ssub.s32 1, %s8
  %s11 = scalar_select 0, %s10, %s8
  $region1: #{ann_forward.1} parent=0
    #allocation2 [shape = 'u8[4096]{0}', space=vmem, size = 0x1000, scoped, tag = 'output window, operand 0']
    #allocation3 [shape = 's32[2]{0}', space=sflag, size = 0x8, scoped, tag = 'scoped memory for ann_forward.1']
    %12 = vsyncpa [#allocation3], 0
    %s13 = scalar_lea.sflag [#allocation3], 1
    %14 = vsyncpa %s13, 0
    loop: start=0, step=1, limit=4
    $region2: #{ann_forward.1} parent=1 // loop_pre_header
      _
    $region3: #{ann_forward.1} parent=1 // loop_header
      %s16 = sphi 0, %s20
      %p17 = scmp.ge.s32.totalorder %s16, 4
      %s26 = sphi 0, %s28
      %s29 = sphi 0, %s26
      %s30 = sphi 0, %s29
      %s46 = sphi 0, %s30
      %s50 = sphi 0, %s50
      %s52 = sphi 0, %s50
      %s53 = sphi 0, %s52
      %s67 = sphi 0, %s53
      %s71 = sphi 0, %s71
      %s73 = sphi 0, %s71
      %s74 = sphi 0, %s73
      %s88 = sphi 0, %s74
      %s92 = sphi 0, %s92
      %s94 = sphi 0, %s92
      %s95 = sphi 0, %s94
      %s109 = sphi 0, %s95
      %s113 = sphi 0, %s113
      %s115 = sphi 0, %s113
      %s116 = sphi 0, %s115
      %s130 = sphi 0, %s116
      %s134 = sphi 0, %s134
      %s136 = sphi 0, %s134
      %s137 = sphi 0, %s136
      %s151 = sphi 0, %s137
      %s155 = sphi 0, %s155
      %s157 = sphi 0, %s155
      %s158 = sphi 0, %s157
      %s172 = sphi 0, %s158
      %s178 = sphi 0, %s180
      %s181 = sphi 0, %s178
      %s182 = sphi 0, %s181
      %s198 = sphi 0, %s182
    $region4: #{ann_forward.1} parent=1 // loop_header_branch
      %19 = sbr.rel (%p17) target = $region8
    $region5: #{ann_forward.1} parent=1 // loop_body
      %s21 = ssub.s32 %s16, 1
      %s22 = ssub.s32 %s16, 2
      %s23 = sadd.s32 %s16, 1
      %s24 = ssub.s32 %s16, %s23
      %p25 = scmp.eq.s32.totalorder %s24, 0
      %s27 = sadd.s32 %s26, 1
      %s28 = scalar_select %p25, %s26, %s27
      %p31 = pneg %p25
      %p32 = scmp.eq.s32.totalorder %s16, 1
      %p33 = por %p31, %p32
      %p34 = scmp.ne.s32.totalorder %s26, %s29
      %p35 = scmp.eq.s32.totalorder %s16, 0
      %p36 = por %p34, %p35
      %p37 = scmp.ne.s32.totalorder %s26, %s29
      %p38 = scmp.eq.s32.totalorder %s21, 1
      %p39 = por %p37, %p38
      %p40 = scmp.ne.s32.totalorder %s29, %s30
      %p41 = scmp.eq.s32.totalorder %s21, 0
      %p42 = por %p40, %p41
      %p43 = scmp.ne.s32.totalorder %s29, %s30
      %p44 = scmp.eq.s32.totalorder %s22, 1
      %p45 = por %p43, %p44
      %p47 = scmp.ne.s32.totalorder %s30, %s46
      %p48 = scmp.eq.s32.totalorder %s22, 0
      %p49 = por %p47, %p48
      %s51 = sadd.s32 %s50, 1
      %p54 = scmp.eq.s32.totalorder %s16, 1
      %p55 = scmp.ne.s32.totalorder %s50, %s52
      %p56 = scmp.eq.s32.totalorder %s16, 0
      %p57 = por %p55, %p56
      %p58 = scmp.ne.s32.totalorder %s50, %s52
      %p59 = scmp.eq.s32.totalorder %s21, 1
      %p60 = por %p58, %p59
      %p61 = scmp.ne.s32.totalorder %s52, %s53
      %p62 = scmp.eq.s32.totalorder %s21, 0
      %p63 = por %p61, %p62
      %p64 = scmp.ne.s32.totalorder %s52, %s53
      %p65 = scmp.eq.s32.totalorder %s22, 1
      %p66 = por %p64, %p65
      %p68 = scmp.ne.s32.totalorder %s53, %s67
      %p69 = scmp.eq.s32.totalorder %s22, 0
      %p70 = por %p68, %p69
      %s72 = sadd.s32 %s71, 1
      %p75 = scmp.eq.s32.totalorder %s16, 1
      %p76 = scmp.ne.s32.totalorder %s71, %s73
      %p77 = scmp.eq.s32.totalorder %s16, 0
      %p78 = por %p76, %p77
      %p79 = scmp.ne.s32.totalorder %s71, %s73
      %p80 = scmp.eq.s32.totalorder %s21, 1
      %p81 = por %p79, %p80
      %p82 = scmp.ne.s32.totalorder %s73, %s74
      %p83 = scmp.eq.s32.totalorder %s21, 0
      %p84 = por %p82, %p83
      %p85 = scmp.ne.s32.totalorder %s73, %s74
      %p86 = scmp.eq.s32.totalorder %s22, 1
      %p87 = por %p85, %p86
      %p89 = scmp.ne.s32.totalorder %s74, %s88
      %p90 = scmp.eq.s32.totalorder %s22, 0
      %p91 = por %p89, %p90
      %s93 = sadd.s32 %s92, 1
      %p96 = scmp.eq.s32.totalorder %s16, 1
      %p97 = scmp.ne.s32.totalorder %s92, %s94
      %p98 = scmp.eq.s32.totalorder %s16, 0
      %p99 = por %p97, %p98
      %p100 = scmp.ne.s32.totalorder %s92, %s94
      %p101 = scmp.eq.s32.totalorder %s21, 1
      %p102 = por %p100, %p101
      %p103 = scmp.ne.s32.totalorder %s94, %s95
      %p104 = scmp.eq.s32.totalorder %s21, 0
      %p105 = por %p103, %p104
      %p106 = scmp.ne.s32.totalorder %s94, %s95
      %p107 = scmp.eq.s32.totalorder %s22, 1
      %p108 = por %p106, %p107
      %p110 = scmp.ne.s32.totalorder %s95, %s109
      %p111 = scmp.eq.s32.totalorder %s22, 0
      %p112 = por %p110, %p111
      %s114 = sadd.s32 %s113, 1
      %p117 = scmp.eq.s32.totalorder %s16, 1
      %p118 = scmp.ne.s32.totalorder %s113, %s115
      %p119 = scmp.eq.s32.totalorder %s16, 0
      %p120 = por %p118, %p119
      %p121 = scmp.ne.s32.totalorder %s113, %s115
      %p122 = scmp.eq.s32.totalorder %s21, 1
      %p123 = por %p121, %p122
      %p124 = scmp.ne.s32.totalorder %s115, %s116
      %p125 = scmp.eq.s32.totalorder %s21, 0
      %p126 = por %p124, %p125
      %p127 = scmp.ne.s32.totalorder %s115, %s116
      %p128 = scmp.eq.s32.totalorder %s22, 1
      %p129 = por %p127, %p128
      %p131 = scmp.ne.s32.totalorder %s116, %s130
      %p132 = scmp.eq.s32.totalorder %s22, 0
      %p133 = por %p131, %p132
      %s135 = sadd.s32 %s134, 1
      %p138 = scmp.eq.s32.totalorder %s16, 1
      %p139 = scmp.ne.s32.totalorder %s134, %s136
      %p140 = scmp.eq.s32.totalorder %s16, 0
      %p141 = por %p139, %p140
      %p142 = scmp.ne.s32.totalorder %s134, %s136
      %p143 = scmp.eq.s32.totalorder %s21, 1
      %p144 = por %p142, %p143
      %p145 = scmp.ne.s32.totalorder %s136, %s137
      %p146 = scmp.eq.s32.totalorder %s21, 0
      %p147 = por %p145, %p146
      %p148 = scmp.ne.s32.totalorder %s136, %s137
      %p149 = scmp.eq.s32.totalorder %s22, 1
      %p150 = por %p148, %p149
      %p152 = scmp.ne.s32.totalorder %s137, %s151
      %p153 = scmp.eq.s32.totalorder %s22, 0
      %p154 = por %p152, %p153
      %s156 = sadd.s32 %s155, 1
      %p159 = scmp.eq.s32.totalorder %s16, 1
      %p160 = scmp.ne.s32.totalorder %s155, %s157
      %p161 = scmp.eq.s32.totalorder %s16, 0
      %p162 = por %p160, %p161
      %p163 = scmp.ne.s32.totalorder %s155, %s157
      %p164 = scmp.eq.s32.totalorder %s21, 1
      %p165 = por %p163, %p164
      %p166 = scmp.ne.s32.totalorder %s157, %s158
      %p167 = scmp.eq.s32.totalorder %s21, 0
      %p168 = por %p166, %p167
      %p169 = scmp.ne.s32.totalorder %s157, %s158
      %p170 = scmp.eq.s32.totalorder %s22, 1
      %p171 = por %p169, %p170
      %p173 = scmp.ne.s32.totalorder %s158, %s172
      %p174 = scmp.eq.s32.totalorder %s22, 0
      %p175 = por %p173, %p174
      %s176 = ssub.s32 %s16, %s23
      %p177 = scmp.eq.s32.totalorder %s176, 0
      %s179 = sadd.s32 %s178, 1
      %s180 = scalar_select %p177, %s178, %s179
      %p183 = pneg %p177
      %p184 = scmp.eq.s32.totalorder %s16, 1
      %p185 = por %p183, %p184
      %p186 = scmp.ne.s32.totalorder %s178, %s181
      %p187 = scmp.eq.s32.totalorder %s16, 0
      %p188 = por %p186, %p187
      %p189 = scmp.ne.s32.totalorder %s178, %s181
      %p190 = scmp.eq.s32.totalorder %s21, 1
      %p191 = por %p189, %p190
      %p192 = scmp.ne.s32.totalorder %s181, %s182
      %p193 = scmp.eq.s32.totalorder %s21, 0
      %p194 = por %p192, %p193
      %p195 = scmp.ne.s32.totalorder %s181, %s182
      %p196 = scmp.eq.s32.totalorder %s22, 1
      %p197 = por %p195, %p196
      %p199 = scmp.ne.s32.totalorder %s182, %s198
      %p200 = scmp.eq.s32.totalorder %s22, 0
      %p201 = por %p199, %p200
      %p202 = scmp.le.s32.totalorder 1, %s16
      %p203 = scmp.lt.s32.totalorder %s16, 3
      %p204 = pnand %p202, %p203
      %p205 = pneg %p204
      // Predicated region
      $region9: #{ann_forward.1} parent=5 // pred_check
        _
      $region10: #{ann_forward.1} parent=5 // pred_check_branch
        %207 = sbr.rel (%p204) target = $region12
      $region11: #{ann_forward.1} parent=5 // pred_region
        %s208 = ssub.s32 %s16, 1
        // Predicated region
        $region13: #{ann_forward.1} parent=11 // pred_check
          %p209 = pneg %p63
        $region14: #{ann_forward.1} parent=11 // pred_check_branch
          %211 = sbr.rel (%p209) target = $region16
        $region15: #{ann_forward.1} parent=11 // pred_region
          _
        $region16: #{ann_forward.1} parent=11 // pred_fallthru
          _
        // Predicated region
        $region17: #{ann_forward.1} parent=11 // pred_check
          %p212 = pneg %p84
        $region18: #{ann_forward.1} parent=11 // pred_check_branch
          %214 = sbr.rel (%p212) target = $region20
        $region19: #{ann_forward.1} parent=11 // pred_region
          _
        $region20: #{ann_forward.1} parent=11 // pred_fallthru
          _
        // Predicated region
        $region21: #{ann_forward.1} parent=11 // pred_check
          %p215 = pneg %p105
        $region22: #{ann_forward.1} parent=11 // pred_check_branch
          %217 = sbr.rel (%p215) target = $region24
        $region23: #{ann_forward.1} parent=11 // pred_region
          _
        $region24: #{ann_forward.1} parent=11 // pred_fallthru
          _
        // Predicated region
        $region25: #{ann_forward.1} parent=11 // pred_check
          %p218 = pneg %p126
        $region26: #{ann_forward.1} parent=11 // pred_check_branch
          %220 = sbr.rel (%p218) target = $region28
        $region27: #{ann_forward.1} parent=11 // pred_region
          _
        $region28: #{ann_forward.1} parent=11 // pred_fallthru
          _
        // Predicated region
        $region29: #{ann_forward.1} parent=11 // pred_check
          %p221 = pneg %p147
        $region30: #{ann_forward.1} parent=11 // pred_check_branch
          %223 = sbr.rel (%p221) target = $region32
        $region31: #{ann_forward.1} parent=11 // pred_region
          _
        $region32: #{ann_forward.1} parent=11 // pred_fallthru
          _
        // Predicated region
        $region33: #{ann_forward.1} parent=11 // pred_check
          %p224 = pneg %p168
        $region34: #{ann_forward.1} parent=11 // pred_check_branch
          %226 = sbr.rel (%p224) target = $region36
        $region35: #{ann_forward.1} parent=11 // pred_region
          _
        $region36: #{ann_forward.1} parent=11 // pred_fallthru
          _
      $region12: #{ann_forward.1} parent=5 // pred_fallthru
        _
      %p227 = scmp.lt.s32.totalorder %s16, 2
      // Predicated region
      $region37: #{ann_forward.1} parent=5 // pred_check
        %p228 = pneg %p227
      $region38: #{ann_forward.1} parent=5 // pred_check_branch
        %230 = sbr.rel (%p228) target = $region40
      $region39: #{ann_forward.1} parent=5 // pred_region
        // Predicated region
        $region41: #{ann_forward.1} parent=39 // pred_check
          %p231 = pneg %p36
        $region42: #{ann_forward.1} parent=39 // pred_check_branch
          %233 = sbr.rel (%p231) target = $region44
        $region43: #{ann_forward.1} parent=39 // pred_region
          %s234 = smul.u32 32, %s16
          %p235 = scmp.lt.s32.totalorder %s234, 63
          %s236 = scalar_select %p235, %s234, 63
          %s237 = smul.addr %s236, 8
          %s238 = scalar_lea.vmem %s0, %s237
          %s239 = smul.u32 32, %s16
        $region44: #{ann_forward.1} parent=39 // pred_fallthru
          _
      $region40: #{ann_forward.1} parent=5 // pred_fallthru
        _
      %p240 = scmp.le.s32.totalorder 1, %s16
      %p241 = scmp.lt.s32.totalorder %s16, 3
      %p242 = pnand %p240, %p241
      %p243 = pneg %p242
      // Predicated region
      $region45: #{ann_forward.1} parent=5 // pred_check
        _
      $region46: #{ann_forward.1} parent=5 // pred_check_branch
        %245 = sbr.rel (%p242) target = $region48
      $region47: #{ann_forward.1} parent=5 // pred_region
        %s246 = ssub.s32 %s16, 1
        %s247 = smul.u32 32, %s21
        %p248 = scmp.lt.s32.totalorder %s247, 63
        %s249 = scalar_select %p248, %s247, 63
        %s250 = smul.addr %s249, 8
        %s251 = scalar_lea.vmem %s0, %s250
        %p252 = pneg %p42
        %p253 = pneg %p39
        %p254 = pneg %p63
        %p255 = pneg %p60
        %p256 = pneg %p84
        %p257 = pneg %p81
        %p258 = pneg %p105
        %p259 = pneg %p102
        %p260 = pneg %p126
        %p261 = pneg %p123
        %p262 = pneg %p147
        %p263 = pneg %p144
        %p264 = pneg %p168
        %p265 = pneg %p165
        %p266 = pneg %p194
        %p267 = pneg %p191
        %s268 = sand.u32 %s181, 1
        %s269 = scalar_lea.sflag [#allocation3], %s268
        %s270 = sand.u32 %s181, 1
        %s271 = smul.addr %s270, 4
        %s272 = scalar_lea.vmem [#allocation2], %s271
        %s273 = smul.u32 32, %s21
        %p274 = scmp.lt.s32.totalorder %s273, 63
        %s275 = scalar_select %p274, %s273, 63
        %s276 = smul.addr %s275, 8
        %s277 = scalar_lea.vmem %s0, %s276
        %s278 = smul.u32 32, %s21
        %s279 = smul.u32 2, %s21
        %v280 = vld [vmem:[%s277] sm:$0xff]
        %v281 = vld [vmem:[%s277 + $0x8] sm:$0xff]
        %v282 = vld [vmem:[%s277 + $0x10] sm:$0xff]
        %v283 = vld [vmem:[%s277 + $0x18] sm:$0xff]
        %v284 = vld [vmem:[%s277 + $0x20] sm:$0xff]
        %v285 = vld [vmem:[%s277 + $0x28] sm:$0xff]
        %v286 = vld [vmem:[%s277 + $0x30] sm:$0xff]
        %v287 = vld [vmem:[%s277 + $0x38] sm:$0xff]
        %v288 = vld [vmem:[%s277 + $0x40] sm:$0xff]
        %v289 = vld [vmem:[%s277 + $0x48] sm:$0xff]
        %v290 = vld [vmem:[%s277 + $0x50] sm:$0xff]
        %v291 = vld [vmem:[%s277 + $0x58] sm:$0xff]
        %v292 = vld [vmem:[%s277 + $0x60] sm:$0xff]
        %v293 = vld [vmem:[%s277 + $0x68] sm:$0xff]
        %v294 = vld [vmem:[%s277 + $0x70] sm:$0xff]
        %v295 = vld [vmem:[%s277 + $0x78] sm:$0xff]
        %v296 = vld [vmem:[%s277 + $0x80] sm:$0xff]
        %v297 = vld [vmem:[%s277 + $0x88] sm:$0xff]
        %v298 = vld [vmem:[%s277 + $0x90] sm:$0xff]
        %v299 = vld [vmem:[%s277 + $0x98] sm:$0xff]
        %v300 = vld [vmem:[%s277 + $0xa0] sm:$0xff]
        %v301 = vld [vmem:[%s277 + $0xa8] sm:$0xff]
        %v302 = vld [vmem:[%s277 + $0xb0] sm:$0xff]
        %v303 = vld [vmem:[%s277 + $0xb8] sm:$0xff]
        %v304 = vld [vmem:[%s277 + $0xc0] sm:$0xff]
        %v305 = vld [vmem:[%s277 + $0xc8] sm:$0xff]
        %v306 = vld [vmem:[%s277 + $0xd0] sm:$0xff]
        %v307 = vld [vmem:[%s277 + $0xd8] sm:$0xff]
        %v308 = vld [vmem:[%s277 + $0xe0] sm:$0xff]
        %v309 = vld [vmem:[%s277 + $0xe8] sm:$0xff]
        %v310 = vld [vmem:[%s277 + $0xf0] sm:$0xff]
        %v311 = vld [vmem:[%s277 + $0xf8] sm:$0xff]
        %v312 = vld [vmem:[%s1] sm:$0xff]
        %v313 = vld [vmem:[%s1 + $0x8] sm:$0xff]
        %v314 = vld [vmem:[%s1 + $0x10] sm:$0xff]
        %v315 = vld [vmem:[%s1 + $0x18] sm:$0x1]
        %v316 = vld [vmem:[%s2] sm:$0xff]
        %v317 = vld [vmem:[%s2 + $0x8] sm:$0xff]
        %v318 = vld [vmem:[%s2 + $0x10] sm:$0xff]
        %v319 = vld [vmem:[%s2 + $0x18] sm:$0x1]
        %321 = vset.pattern.permute.xlu0 0
        %322 = vperm.xlu0 %321, %v316
        %v323 = vpop.permute.xlu0 %322
        %326 = vset.pattern.permute.xlu0 0
        %327 = vperm.xlu0 %326, %v317
        %v328 = vpop.permute.xlu0 %327
        %331 = vset.pattern.permute.xlu0 0
        %332 = vperm.xlu0 %331, %v318
        %v333 = vpop.permute.xlu0 %332
        %336 = vset.pattern.permute.xlu0 0
        %337 = vperm.xlu0 %336, %v319
        %v338 = vpop.permute.xlu0 %337
        %vm340 = vcmask 64512
        %v342 = vsel %vm340, %v312, 0
        %v345 = vsel %vm340, %v313, 0
        %v348 = vsel %vm340, %v314, 0
        %v351 = vsel %vm340, %v315, 0
        %v354 = vsel %vm340, %v280, 0
        %v357 = vsel %vm340, %v281, 0
        %v360 = vsel %vm340, %v282, 0
        %v363 = vsel %vm340, %v283, 0
        %v366 = vsel %vm340, %v284, 0
        %v369 = vsel %vm340, %v285, 0
        %v372 = vsel %vm340, %v286, 0
        %v375 = vsel %vm340, %v287, 0
        %v378 = vsel %vm340, %v288, 0
        %v381 = vsel %vm340, %v289, 0
        %v384 = vsel %vm340, %v290, 0
        %v387 = vsel %vm340, %v291, 0
        %v390 = vsel %vm340, %v292, 0
        %v393 = vsel %vm340, %v293, 0
        %v396 = vsel %vm340, %v294, 0
        %v399 = vsel %vm340, %v295, 0
        %v402 = vsel %vm340, %v296, 0
        %v405 = vsel %vm340, %v297, 0
        %v408 = vsel %vm340, %v298, 0
        %v411 = vsel %vm340, %v299, 0
        %v414 = vsel %vm340, %v300, 0
        %v417 = vsel %vm340, %v301, 0
        %v420 = vsel %vm340, %v302, 0
        %v423 = vsel %vm340, %v303, 0
        %v426 = vsel %vm340, %v304, 0
        %v429 = vsel %vm340, %v305, 0
        %v432 = vsel %vm340, %v306, 0
        %v435 = vsel %vm340, %v307, 0
        %v438 = vsel %vm340, %v308, 0
        %v441 = vsel %vm340, %v309, 0
        %v444 = vsel %vm340, %v310, 0
        %v447 = vsel %vm340, %v311, 0
        %449 = vmatprep.subr.mxu0 0.0
        %450 = vmatpush1.xpose.msra.mxu0 %v354
        %451 = vmatprep.subr.mxu0 0.0
        %452 = vmatpush1.xpose.msra.mxu0 %v357
        %453 = vmatprep.subr.mxu0 0.0
        %454 = vmatpush1.xpose.msra.mxu0 %v360
        %455 = vmatprep.subr.mxu0 0.0
        %456 = vmatpush1.xpose.msra.mxu0 %v363
        %457 = vmatprep.subr.mxu0 0.0
        %458 = vmatpush1.xpose.msra.mxu0 %v366
        %459 = vmatprep.subr.mxu0 0.0
        %460 = vmatpush1.xpose.msra.mxu0 %v369
        %461 = vmatprep.subr.mxu0 0.0
        %462 = vmatpush1.xpose.msra.mxu0 %v372
        %463 = vmatprep.subr.mxu0 0.0
        %464 = vmatpush1.xpose.msra.mxu0 %v375
        %465 = vmatprep.subr.mxu0 0.0
        %466 = vmatpush1.xpose.msra.mxu0 %v378
        %467 = vmatprep.subr.mxu0 0.0
        %468 = vmatpush1.xpose.msra.mxu0 %v381
        %469 = vmatprep.subr.mxu0 0.0
        %470 = vmatpush1.xpose.msra.mxu0 %v384
        %471 = vmatprep.subr.mxu0 0.0
        %472 = vmatpush1.xpose.msra.mxu0 %v387
        %473 = vmatprep.subr.mxu0 0.0
        %474 = vmatpush1.xpose.msra.mxu0 %v390
        %475 = vmatprep.subr.mxu0 0.0
        %476 = vmatpush1.xpose.msra.mxu0 %v393
        %477 = vmatprep.subr.mxu0 0.0
        %478 = vmatpush1.xpose.msra.mxu0 %v396
        %479 = vmatprep.subr.mxu0 0.0
        %480 = vmatpush1.xpose.msra.mxu0 %v399
        %481 = vmatprep.subr.mxu0 0.0
        %482 = vmatpush1.xpose.msra.mxu0 %v402
        %483 = vmatprep.subr.mxu0 0.0
        %484 = vmatpush1.xpose.msra.mxu0 %v405
        %485 = vmatprep.subr.mxu0 0.0
        %486 = vmatpush1.xpose.msra.mxu0 %v408
        %487 = vmatprep.subr.mxu0 0.0
        %488 = vmatpush1.xpose.msra.mxu0 %v411
        %489 = vmatprep.subr.mxu0 0.0
        %490 = vmatpush1.xpose.msra.mxu0 %v414
        %491 = vmatprep.subr.mxu0 0.0
        %492 = vmatpush1.xpose.msra.mxu0 %v417
        %493 = vmatprep.subr.mxu0 0.0
        %494 = vmatpush1.xpose.msra.mxu0 %v420
        %495 = vmatprep.subr.mxu0 0.0
        %496 = vmatpush1.xpose.msra.mxu0 %v423
        %497 = vmatprep.subr.mxu0 0.0
        %498 = vmatpush1.xpose.msra.mxu0 %v426
        %499 = vmatprep.subr.mxu0 0.0
        %500 = vmatpush1.xpose.msra.mxu0 %v429
        %501 = vmatprep.subr.mxu0 0.0
        %502 = vmatpush1.xpose.msra.mxu0 %v432
        %503 = vmatprep.subr.mxu0 0.0
        %504 = vmatpush1.xpose.msra.mxu0 %v435
        %505 = vmatprep.subr.mxu0 0.0
        %506 = vmatpush1.xpose.msra.mxu0 %v438
        %507 = vmatprep.subr.mxu0 0.0
        %508 = vmatpush1.xpose.msra.mxu0 %v441
        %509 = vmatprep.subr.mxu0 0.0
        %510 = vmatpush1.xpose.msra.mxu0 %v444
        %511 = vmatprep.subr.mxu0 0.0
        %512 = vmatpush1.xpose.msra.mxu0 %v447
        %513 = vmatprep.mubr.f32.mxu0 0.0
        %514 = vmatmul.mubr.f32.gmra.mrb[0].mxu0 %v342
        %v515 = vpop.f32.mrb[0].mxu0
        %v516 = vadd.f32 %v323, %v515
        %v517 = vpop.f32.mrb[0].mxu0
        %v518 = vadd.f32 %v323, %v517
        %519 = vmatprep.mubr.f32.mxu0 0.0
        %520 = vmatmul.mubr.f32.gmra.mrb[0].mxu0 %v345
        %v521 = vpop.f32.mrb[0].mxu0
        %v522 = vadd.f32 %v328, %v521
        %v523 = vpop.f32.mrb[0].mxu0
        %v524 = vadd.f32 %v328, %v523
        %525 = vmatprep.mubr.f32.mxu0 0.0
        %526 = vmatmul.mubr.f32.gmra.mrb[0].mxu0 %v348
        %v527 = vpop.f32.mrb[0].mxu0
        %v528 = vadd.f32 %v333, %v527
        %v529 = vpop.f32.mrb[0].mxu0
        %v530 = vadd.f32 %v333, %v529
        %531 = vmatprep.mubr.f32.mxu0 0.0
        %532 = vmatmul.mubr.f32.gmra.mrb[0].mxu0 %v351
        %v533 = vpop.f32.mrb[0].mxu0
        %v534 = vadd.f32 %v338, %v533
        %v535 = vpop.f32.mrb[0].mxu0
        %v536 = vadd.f32 %v338, %v535
        %537 = vdwg.mxu0
        %v538 = vmax.f32 %v516, 0.0
        %v539 = vmax.f32 %v518, 0.0
        %v540 = vmax.f32 %v522, 0.0
        %v541 = vmax.f32 %v524, 0.0
        %v542 = vmax.f32 %v528, 0.0
        %v543 = vmax.f32 %v530, 0.0
        %v544 = vmax.f32 %v534, 0.0
        %v545 = vmax.f32 %v536, 0.0
        %v546 = vld [vmem:[%s3] sm:$0xff]
        %v547 = vld [vmem:[%s3 + $0x8] sm:$0xff]
        %v548 = vld [vmem:[%s3 + $0x10] sm:$0xf]
        %v549 = vld [vmem:[%s4] sm:$0xff]
        %v550 = vld [vmem:[%s4 + $0x8] sm:$0xff]
        %v551 = vld [vmem:[%s4 + $0x10] sm:$0xf]
        %553 = vset.pattern.permute.xlu0 0
        %554 = vperm.xlu0 %553, %v549
        %v555 = vpop.permute.xlu0 %554
        %558 = vset.pattern.permute.xlu0 0
        %559 = vperm.xlu0 %558, %v550
        %v560 = vpop.permute.xlu0 %559
        %563 = vset.pattern.permute.xlu0 0
        %564 = vperm.xlu0 %563, %v551
        %v565 = vpop.permute.xlu0 %564
        %vm567 = vcmask 203776
        %v569 = vsel %vm567, %v546, 0
        %v572 = vsel %vm567, %v547, 0
        %v575 = vsel %vm567, %v548, 0
        %vm577 = vcmask 1040384
        %v579 = vsel %vm577, %v544, 0
        %v582 = vsel %vm577, %v545, 0
        %584 = vmatprep.subr.mxu0 %v539
        %585 = vmatpush1.msra.mxu0 %v538
        %586 = vmatprep.subr.mxu0 %v541
        %587 = vmatpush1.msra.mxu0 %v540
        %588 = vmatprep.subr.mxu0 %v543
        %589 = vmatpush1.msra.mxu0 %v542
        %590 = vmatprep.subr.mxu0 %v582
        %591 = vmatpush1.msra.mxu0 %v579
        %592 = vmatprep.subr.mxu0 0.0
        %593 = vmatpush1.msra.mxu0 0.0
        %594 = vmatprep.subr.mxu0 0.0
        %595 = vmatpush1.msra.mxu0 0.0
        %596 = vmatprep.subr.mxu0 0.0
        %597 = vmatpush1.msra.mxu0 0.0
        %598 = vmatprep.subr.mxu0 0.0
        %599 = vmatpush1.msra.mxu0 0.0
        %600 = vmatprep.subr.mxu0 0.0
        %601 = vmatpush1.msra.mxu0 0.0
        %602 = vmatprep.subr.mxu0 0.0
        %603 = vmatpush1.msra.mxu0 0.0
        %604 = vmatprep.subr.mxu0 0.0
        %605 = vmatpush1.msra.mxu0 0.0
        %606 = vmatprep.subr.mxu0 0.0
        %607 = vmatpush1.msra.mxu0 0.0
        %608 = vmatprep.subr.mxu0 0.0
        %609 = vmatpush1.msra.mxu0 0.0
        %610 = vmatprep.subr.mxu0 0.0
        %611 = vmatpush1.msra.mxu0 0.0
        %612 = vmatprep.subr.mxu0 0.0
        %613 = vmatpush1.msra.mxu0 0.0
        %614 = vmatprep.subr.mxu0 0.0
        %615 = vmatpush1.msra.mxu0 0.0
        %616 = vmatprep.subr.mxu0 0.0
        %617 = vmatpush1.msra.mxu0 0.0
        %618 = vmatprep.subr.mxu0 0.0
        %619 = vmatpush1.msra.mxu0 0.0
        %620 = vmatprep.subr.mxu0 0.0
        %621 = vmatpush1.msra.mxu0 0.0
        %622 = vmatprep.subr.mxu0 0.0
        %623 = vmatpush1.msra.mxu0 0.0
        %624 = vmatprep.subr.mxu0 0.0
        %625 = vmatpush1.msra.mxu0 0.0
        %626 = vmatprep.subr.mxu0 0.0
        %627 = vmatpush1.msra.mxu0 0.0
        %628 = vmatprep.subr.mxu0 0.0
        %629 = vmatpush1.msra.mxu0 0.0
        %630 = vmatprep.subr.mxu0 0.0
        %631 = vmatpush1.msra.mxu0 0.0
        %632 = vmatprep.subr.mxu0 0.0
        %633 = vmatpush1.msra.mxu0 0.0
        %634 = vmatprep.subr.mxu0 0.0
        %635 = vmatpush1.msra.mxu0 0.0
        %636 = vmatprep.subr.mxu0 0.0
        %637 = vmatpush1.msra.mxu0 0.0
        %638 = vmatprep.subr.mxu0 0.0
        %639 = vmatpush1.msra.mxu0 0.0
        %640 = vmatprep.subr.mxu0 0.0
        %641 = vmatpush1.msra.mxu0 0.0
        %642 = vmatprep.subr.mxu0 0.0
        %643 = vmatpush1.msra.mxu0 0.0
        %644 = vmatprep.subr.mxu0 0.0
        %645 = vmatpush1.msra.mxu0 0.0
        %646 = vmatprep.subr.mxu0 0.0
        %647 = vmatpush1.msra.mxu0 0.0
        %648 = vmatprep.mubr.f32.mxu0 0.0
        %649 = vmatmul.mubr.f32.gmra.mrb[0].mxu0 %v569
        %v650 = vpop.f32.mrb[0].mxu0
        %v651 = vadd.f32 %v555, %v650
        %v652 = vpop.f32.mrb[0].mxu0
        %v653 = vadd.f32 %v555, %v652
        %654 = vmatprep.mubr.f32.mxu0 0.0
        %655 = vmatmul.mubr.f32.gmra.mrb[0].mxu0 %v572
        %v656 = vpop.f32.mrb[0].mxu0
        %v657 = vadd.f32 %v560, %v656
        %v658 = vpop.f32.mrb[0].mxu0
        %v659 = vadd.f32 %v560, %v658
        %660 = vmatprep.mubr.f32.mxu0 0.0
        %661 = vmatmul.mubr.f32.gmra.mrb[0].mxu0 %v575
        %v662 = vpop.f32.mrb[0].mxu0
        %v663 = vadd.f32 %v565, %v662
        %v664 = vpop.f32.mrb[0].mxu0
        %v665 = vadd.f32 %v565, %v664
        %666 = vdwg.mxu0
        %v667 = vmax.f32 %v651, 0.0
        %v668 = vmax.f32 %v653, 0.0
        %v669 = vmax.f32 %v657, 0.0
        %v670 = vmax.f32 %v659, 0.0
        %v671 = vmax.f32 %v663, 0.0
        %v672 = vmax.f32 %v665, 0.0
        %v673 = vld [vmem:[%s5] sm:$0x3]
        %v674 = vld [vmem:[%s6] sm:$0x3]
        %676 = vset.pattern.permute.xlu0 0
        %677 = vperm.xlu0 %676, %v674
        %v678 = vpop.permute.xlu0 %677
        %vm680 = vcmask 162816
        %v682 = vsel %vm680, %v673, 0
        %vm684 = vcmask 1043456
        %v686 = vsel %vm684, %v671, 0
        %v689 = vsel %vm684, %v672, 0
        %691 = vmatprep.subr.mxu0 %v668
        %692 = vmatpush1.msra.mxu0 %v667
        %693 = vmatprep.subr.mxu0 %v670
        %694 = vmatpush1.msra.mxu0 %v669
        %695 = vmatprep.subr.mxu0 %v689
        %696 = vmatpush1.msra.mxu0 %v686
        %697 = vmatprep.subr.mxu0 0.0
        %698 = vmatpush1.msra.mxu0 0.0
        %699 = vmatprep.subr.mxu0 0.0
        %700 = vmatpush1.msra.mxu0 0.0
        %701 = vmatprep.subr.mxu0 0.0
        %702 = vmatpush1.msra.mxu0 0.0
        %703 = vmatprep.subr.mxu0 0.0
        %704 = vmatpush1.msra.mxu0 0.0
        %705 = vmatprep.subr.mxu0 0.0
        %706 = vmatpush1.msra.mxu0 0.0
        %707 = vmatprep.subr.mxu0 0.0
        %708 = vmatpush1.msra.mxu0 0.0
        %709 = vmatprep.subr.mxu0 0.0
        %710 = vmatpush1.msra.mxu0 0.0
        %711 = vmatprep.subr.mxu0 0.0
        %712 = vmatpush1.msra.mxu0 0.0
        %713 = vmatprep.subr.mxu0 0.0
        %714 = vmatpush1.msra.mxu0 0.0
        %715 = vmatprep.subr.mxu0 0.0
        %716 = vmatpush1.msra.mxu0 0.0
        %717 = vmatprep.subr.mxu0 0.0
        %718 = vmatpush1.msra.mxu0 0.0
        %719 = vmatprep.subr.mxu0 0.0
        %720 = vmatpush1.msra.mxu0 0.0
        %721 = vmatprep.subr.mxu0 0.0
        %722 = vmatpush1.msra.mxu0 0.0
        %723 = vmatprep.subr.mxu0 0.0
        %724 = vmatpush1.msra.mxu0 0.0
        %725 = vmatprep.subr.mxu0 0.0
        %726 = vmatpush1.msra.mxu0 0.0
        %727 = vmatprep.subr.mxu0 0.0
        %728 = vmatpush1.msra.mxu0 0.0
        %729 = vmatprep.subr.mxu0 0.0
        %730 = vmatpush1.msra.mxu0 0.0
        %731 = vmatprep.subr.mxu0 0.0
        %732 = vmatpush1.msra.mxu0 0.0
        %733 = vmatprep.subr.mxu0 0.0
        %734 = vmatpush1.msra.mxu0 0.0
        %735 = vmatprep.subr.mxu0 0.0
        %736 = vmatpush1.msra.mxu0 0.0
        %737 = vmatprep.subr.mxu0 0.0
        %738 = vmatpush1.msra.mxu0 0.0
        %739 = vmatprep.subr.mxu0 0.0
        %740 = vmatpush1.msra.mxu0 0.0
        %741 = vmatprep.subr.mxu0 0.0
        %742 = vmatpush1.msra.mxu0 0.0
        %743 = vmatprep.subr.mxu0 0.0
        %744 = vmatpush1.msra.mxu0 0.0
        %745 = vmatprep.subr.mxu0 0.0
        %746 = vmatpush1.msra.mxu0 0.0
        %747 = vmatprep.subr.mxu0 0.0
        %748 = vmatpush1.msra.mxu0 0.0
        %749 = vmatprep.subr.mxu0 0.0
        %750 = vmatpush1.msra.mxu0 0.0
        %751 = vmatprep.subr.mxu0 0.0
        %752 = vmatpush1.msra.mxu0 0.0
        %753 = vmatprep.subr.mxu0 0.0
        %754 = vmatpush1.msra.mxu0 0.0
        %755 = vmatprep.mubr.f32.mxu0 0.0
        %756 = vmatmul.mubr.f32.gmra.mrb[0].mxu0 %v682
        %v757 = vpop.f32.mrb[0].mxu0
        %v758 = vadd.f32 %v678, %v757
        %v759 = vpop.f32.mrb[0].mxu0
        %v760 = vadd.f32 %v678, %v759
        %761 = vdwg.mxu0
        %v764 = vcombine.low %v758, %v760
        %v766 = vunpack.c.l.s4 1983009808
        %v767 = vunpack.c.0.s8 %v766
        %v768 = vlaneseq
        %v769 = vshrl.u32 %v768, 7
        %v770 = vsub.s32 %v767, %v769
        %v771 = vrot.slane %v764, %v770
        %773 = vst [vmem:[%s272] sm:$0xf] %v771
        %s774 = sand.u32 %s181, 1
        %s775 = scalar_lea.sflag [#allocation3], %s774
        %s776 = sand.u32 %s181, 1
        %s777 = smul.addr %s776, 4
        %s778 = scalar_lea.vmem [#allocation2], %s777
        // Predicated region
        $region49: #{ann_forward.1} parent=47 // pred_check
          %p779 = pneg %p191
        $region50: #{ann_forward.1} parent=47 // pred_check_branch
          %781 = sbr.rel (%p779) target = $region52
        $region51: #{ann_forward.1} parent=47 // pred_region
          %s782 = smul.u32 2, %s21
          %s784 = ssub.s32 64, 64
          %785 = vsyncadd %s775, %s784
          %s786 = smul.addr %s782, 32
          %s787 = scalar_lea.hbm %s7, %s786
          %s789 = sshll.u32 %s778, 4
          %s790 = int_to_ptr.vmem [resolvable:$true] %s789
          %792 = dma.vmem_to_hbm [thread:$0]  %s790, 64, %s787, %s775
        $region52: #{ann_forward.1} parent=47 // pred_fallthru
          _
      $region48: #{ann_forward.1} parent=5 // pred_fallthru
        _
      %p793 = scmp.le.s32.totalorder 2, %s16
      // Predicated region
      $region53: #{ann_forward.1} parent=5 // pred_check
        %p794 = pneg %p793
      $region54: #{ann_forward.1} parent=5 // pred_check_branch
        %796 = sbr.rel (%p794) target = $region56
      $region55: #{ann_forward.1} parent=5 // pred_region
        %s797 = ssub.s32 %s16, 2
        // Predicated region
        $region57: #{ann_forward.1} parent=55 // pred_check
          %p798 = pneg %p197
        $region58: #{ann_forward.1} parent=55 // pred_check_branch
          %800 = sbr.rel (%p798) target = $region60
        $region59: #{ann_forward.1} parent=55 // pred_region
          %s801 = sand.u32 %s182, 1
          %s802 = scalar_lea.sflag [#allocation3], %s801
          %s803 = sand.u32 %s182, 1
          %s804 = smul.addr %s803, 4
          %s805 = scalar_lea.vmem [#allocation2], %s804
          %806 = dma.done %s802, 64
        $region60: #{ann_forward.1} parent=55 // pred_fallthru
          _
      $region56: #{ann_forward.1} parent=5 // pred_fallthru
        _
    $region6: #{ann_forward.1} parent=1 // loop_footer
      %s20 = sadd.s32 1, %s16
    $region7: #{ann_forward.1} parent=1 // loop_footer_branch
      %15 = sbr.rel target = $region3
    $region8: #{ann_forward.1} parent=1 // loop_exit
      _
    %807 = vsyncpa [#allocation3], 1
    %s808 = scalar_lea.sflag [#allocation3], 1
    %809 = vsyncpa %s808, 1

</llo_original>
